<compile_context>
chip_gen: v6e
topology: v6e:2x2x1
jax: 0.10.0
libtpu: 0.0.40
codegen_flags: <defaults>
</compile_context>

<pallas_src>
import functools

import numpy as np

import jax
import jax.numpy as jnp
from jax.experimental import pallas as pl
from jax.experimental.pallas import tpu as pltpu


def _round_up(x, m):
    return (x + m - 1) // m * m


# ----------------------------------------------------------------------------
# Init-time packing: unroll a Conv2d (PyTorch NCHW / OIHW semantics) into a
# dense matrix so the forward pass becomes a chain of plain matmuls.
# ----------------------------------------------------------------------------
def _conv_as_dense(w, b, stride, padding, hin, win):
    """Returns (M, bvec, ho, wo) with M of shape (cin*hin*win, cout*ho*wo)
    such that for one image x (cin, hin, win):
        vec(conv(x)) = vec(x) @ M + bvec
    with vec() = NCHW row-major flattening on both sides.  Weights are
    scattered directly (no O(nin^2) identity; init memory = matrix itself)."""
    w = np.asarray(w, np.float32)
    cout, cin, kh, kw = w.shape
    ho = (hin + 2 * padding - kh) // stride + 1
    wo = (win + 2 * padding - kw) // stride + 1

    M = np.zeros((cin, hin, win, cout, ho, wo), np.float32)
    wt = np.transpose(w, (2, 3, 1, 0))                     # (kh, kw, cin, cout)
    for io in range(ho):
        for di in range(kh):
            ii = io * stride - padding + di
            if ii < 0 or ii >= hin:
                continue
            for jo in range(wo):
                for dj in range(kw):
                    jj = jo * stride - padding + dj
                    if jj < 0 or jj >= win:
                        continue
                    M[:, ii, jj, :, io, jo] = wt[di, dj]
    M = M.reshape(cin * hin * win, cout * ho * wo)

    bvec = None
    if b is not None:
        bvec = np.repeat(np.asarray(b, np.float32), ho * wo)
    return M, bvec, ho, wo


# ----------------------------------------------------------------------------
# Fused Pallas kernel: full network as a chain of matmul(+bias+LeakyReLU)
# ----------------------------------------------------------------------------
def _fused_net_kernel(*refs, num_layers, slope, compute_dtype):
    """refs = (x_ref, m_0..m_{L-1}, b_0..b_{L-2}, o_ref).

    Layers 0..L-2: matmul + bias + LeakyReLU(slope); layer L-1: matmul only
    (final conv is bias-free, no activation).  Matmuls run in bf16 on the MXU
    with f32 accumulation; bias-add / LeakyReLU epilogues stay in f32 (v5e has
    no bf16 VPU).  Activations stay VMEM/register resident across layers."""
    x_ref = refs[0]
    o_ref = refs[-1]
    mats = refs[1:1 + num_layers]
    biases = refs[1 + num_layers:-1]

    h = x_ref[...].astype(compute_dtype)
    for l in range(num_layers):
        acc = jnp.dot(h, mats[l][...], preferred_element_type=jnp.float32)
        if l < num_layers - 1:
            acc = acc + biases[l][...]
            acc = jnp.where(acc > 0, acc, slope * acc)
            h = acc.astype(compute_dtype)
        else:
            o_ref[...] = acc


# ----------------------------------------------------------------------------
# Parameter construction (mirrors the PyTorch Classifier) + packed forward
# ----------------------------------------------------------------------------
def init_classifier_params(key, image_size=16, input_nc=1, conv_dim=8,
                           n_layers=2, class_num=2):
    """Random-init conv weights matching the torch module, pack them as dense
    unrolled matrices (bf16, tile-padded) + broadcast bias rows (f32).
    Returns (packed_params, raw_layers) where raw_layers is used by the
    pure-JAX f32 reference."""
    cfgs = [dict(cin=input_nc, cout=conv_dim, k=4, s=2, p=1, final=False)]
    curr = conv_dim
    for _ in range(1, n_layers):
        cfgs.append(dict(cin=curr, cout=curr * 2, k=4, s=2, p=1, final=False))
        curr *= 2
    cfgs.append(dict(cin=curr, cout=curr, k=3, s=1, p=1, final=False))
    kfin = image_size // (2 ** n_layers)
    cfgs.append(dict(cin=curr, cout=class_num, k=kfin, s=1, p=0, final=True))

    raw, mats, biases = [], [], []
    hin = win = image_size
    for cfg in cfgs:
        key, k_w, k_b = jax.random.split(key, 3)
        w = jax.random.normal(
            k_w, (cfg["cout"], cfg["cin"], cfg["k"], cfg["k"]), jnp.float32) * 0.05
        b = None if cfg["final"] else (
            jax.random.normal(k_b, (cfg["cout"],), jnp.float32) * 0.05)
        raw.append((w, b, cfg["s"], cfg["p"]))

        M, bvec, hin, win = _conv_as_dense(
            np.asarray(w), None if b is None else np.asarray(b),
            cfg["s"], cfg["p"], hin, win)

        kp = _round_up(M.shape[0], 128)
        np_ = _round_up(M.shape[1], 128)
        Mp = np.zeros((kp, np_), np.float32)
        Mp[:M.shape[0], :M.shape[1]] = M
        mats.append(jnp.asarray(Mp, dtype=jnp.bfloat16))    # bf16 MXU operands
        if bvec is not None:
            bp = np.zeros((1, np_), np.float32)
            bp[0, :bvec.shape[0]] = bvec
            biases.append(jnp.asarray(bp))                   # f32 epilogue
    return dict(mats=tuple(mats), biases=tuple(biases)), raw


@functools.partial(jax.jit, static_argnames=("class_num",))
def classifier_forward(params, x, *, class_num):
    """x: (B, C, H, W) float32 -> (B, class_num) float32."""
    mats = params["mats"]
    biases = params["biases"]
    num_layers = len(mats)

    B = x.shape[0]
    # bf16 vregs pack [16,128]: pad batch rows to a multiple of 16 (not 8).
    # TODO(synk): callers should batch to >=128 rows to fill the MXU M-stream;
    # at that point add a "parallel" batch grid axis and handle the remainder
    # via index_map masking instead of materializing this padded copy.
    Bp = _round_up(max(B, 1), 16)
    Kp = mats[0].shape[0]
    Np = mats[-1].shape[1]

    xf = x.reshape(B, -1)
    xf = jnp.pad(xf, ((0, Bp - B), (0, Kp - xf.shape[1])))

    # Size the scoped-VMEM budget to actual use (+25% headroom).  There is no
    # grid, so every operand is a single-buffered whole-array VMEM block (no
    # pointless double-buffering of the packed weights).
    weight_bytes = sum(m.size * m.dtype.itemsize for m in mats)
    bias_bytes = sum(b.size * b.dtype.itemsize for b in biases)
    max_n = max(m.shape[1] for m in mats)
    act_bytes = Bp * max_n * (4 + 2)            # f32 acc + bf16 h, widest layer
    io_bytes = Bp * Kp * 4 + Bp * Np * 4
    vmem_limit = int(1.25 * (weight_bytes + bias_bytes + act_bytes + io_bytes))
    vmem_limit = min(max(vmem_limit, 16 * 1024 * 1024), 128 * 1024 * 1024)
    # TODO(synk): gate this fused dense-unroll path on the chip's VMEM
    # capacity (64 MiB on v7x) and dispatch to a tiled im2col pipeline (and
    # cross-call weight residency) for larger configs.

    out = pl.pallas_call(
        functools.partial(_fused_net_kernel, num_layers=num_layers,
                          slope=0.1, compute_dtype=jnp.bfloat16),
        out_shape=jax.ShapeDtypeStruct((Bp, Np), jnp.float32),
        compiler_params=pltpu.CompilerParams(vmem_limit_bytes=vmem_limit),
    )(xf, *mats, *biases)

    # final conv output is 1x1 spatial -> y.view(B, -1) == (B, class_num)
    return out[:B, :class_num]


# ----------------------------------------------------------------------------
# Pure-JAX f32 reference (mirrors the torch module op-for-op)
# ----------------------------------------------------------------------------
def reference_forward(raw, x, slope=0.1):
    h = x
    for idx, (w, b, s, p) in enumerate(raw):
        h = jax.lax.conv_general_dilated(
            h, w, window_strides=(s, s), padding=[(p, p), (p, p)],
            dimension_numbers=("NCHW", "OIHW", "NCHW"))
        if b is not None:
            h = h + b.reshape(1, -1, 1, 1)
        if idx < len(raw) - 1:                   # LeakyReLU after every main conv
            h = jnp.where(h > 0, h, slope * h)
    return h.reshape(h.shape[0], -1)


if __name__ == "__main__":
    # Small shapes consistent with the module: image_size=16, input_nc=1,
    # conv_dim=8, n_layers=2, class_num=2, batch=2.
    key = jax.random.PRNGKey(0)
    key, kx = jax.random.split(key)
    x = jax.random.normal(kx, (2, 1, 16, 16), jnp.float32)

    params, raw = init_classifier_params(key, image_size=16, input_nc=1,
                                         conv_dim=8, n_layers=2, class_num=2)

    y = classifier_forward(params, x, class_num=2)
    y = jax.block_until_ready(y)
    assert y.shape == (2, 2), y.shape

    # Validate against the f32 conv-chain reference (tolerance covers bf16
    # MXU operands / bf16 inter-layer activations in the fused kernel).
    y_ref = reference_forward(raw, x)
    np.testing.assert_allclose(np.asarray(y), np.asarray(y_ref),
                               rtol=5e-2, atol=2e-2)

    print("KERNEL_OK")
</pallas_src>

<mosaic_0001>
module attributes {stable_mosaic.version = 11 : i64} {
  func.func @_fused_net_kernel(%arg0: memref<16x256xf32, #tpu.memory_space<vmem>>, %arg1: memref<256x512xbf16, #tpu.memory_space<vmem>>, %arg2: memref<512x256xbf16, #tpu.memory_space<vmem>>, %arg3: memref<256x256xbf16, #tpu.memory_space<vmem>>, %arg4: memref<256x128xbf16, #tpu.memory_space<vmem>>, %arg5: memref<1x512xf32, #tpu.memory_space<vmem>>, %arg6: memref<1x256xf32, #tpu.memory_space<vmem>>, %arg7: memref<1x256xf32, #tpu.memory_space<vmem>>, %arg8: memref<16x128xf32, #tpu.memory_space<vmem>>) attributes {dimension_semantics = [], scalar_prefetch = 0 : i64, scratch_operands = 0 : i64, tpu.core_type = #tpu.core_type<tc>} {
    %c0 = arith.constant 0 : index
    %c0_0 = arith.constant 0 : index
    %0 = vector.load %arg0[%c0, %c0_0] : memref<16x256xf32, #tpu.memory_space<vmem>>, vector<16x256xf32>
    %1 = arith.truncf %0 : vector<16x256xf32> to vector<16x256xbf16>
    %c0_1 = arith.constant 0 : index
    %c0_2 = arith.constant 0 : index
    %2 = vector.load %arg1[%c0_1, %c0_2] : memref<256x512xbf16, #tpu.memory_space<vmem>>, vector<256x512xbf16>
    %cst = arith.constant dense<0.000000e+00> : vector<16x512xf32>
    %3 = tpu.matmul %1, %2, %cst {dimension_numbers = #tpu.dot_dimension_numbers<[1], [0], [0], [1], [0, 0, 1, 1], [], []>} : vector<16x256xbf16>, vector<256x512xbf16>, vector<16x512xf32> -> vector<16x512xf32>
    %c0_3 = arith.constant 0 : index
    %c0_4 = arith.constant 0 : index
    %4 = vector.load %arg5[%c0_3, %c0_4] : memref<1x512xf32, #tpu.memory_space<vmem>>, vector<1x512xf32>
    %5 = vector.broadcast %4 : vector<1x512xf32> to vector<16x512xf32>
    %6 = arith.addf %3, %5 : vector<16x512xf32>
    %cst_5 = arith.constant 0.000000e+00 : f32
    %7 = vector.broadcast %cst_5 : f32 to vector<16x512xf32>
    %8 = arith.cmpf ogt, %6, %7 : vector<16x512xf32>
    %cst_6 = arith.constant 1.000000e-01 : f32
    %9 = vector.broadcast %cst_6 : f32 to vector<16x512xf32>
    %10 = arith.mulf %9, %6 : vector<16x512xf32>
    %11 = arith.select %8, %6, %10 : vector<16x512xi1>, vector<16x512xf32>
    %12 = arith.truncf %11 : vector<16x512xf32> to vector<16x512xbf16>
    %c0_7 = arith.constant 0 : index
    %c0_8 = arith.constant 0 : index
    %13 = vector.load %arg2[%c0_7, %c0_8] : memref<512x256xbf16, #tpu.memory_space<vmem>>, vector<512x256xbf16>
    %cst_9 = arith.constant dense<0.000000e+00> : vector<16x256xf32>
    %14 = tpu.matmul %12, %13, %cst_9 {dimension_numbers = #tpu.dot_dimension_numbers<[1], [0], [0], [1], [0, 0, 1, 1], [], []>} : vector<16x512xbf16>, vector<512x256xbf16>, vector<16x256xf32> -> vector<16x256xf32>
    %c0_10 = arith.constant 0 : index
    %c0_11 = arith.constant 0 : index
    %15 = vector.load %arg6[%c0_10, %c0_11] : memref<1x256xf32, #tpu.memory_space<vmem>>, vector<1x256xf32>
    %16 = vector.broadcast %15 : vector<1x256xf32> to vector<16x256xf32>
    %17 = arith.addf %14, %16 : vector<16x256xf32>
    %cst_12 = arith.constant 0.000000e+00 : f32
    %18 = vector.broadcast %cst_12 : f32 to vector<16x256xf32>
    %19 = arith.cmpf ogt, %17, %18 : vector<16x256xf32>
    %cst_13 = arith.constant 1.000000e-01 : f32
    %20 = vector.broadcast %cst_13 : f32 to vector<16x256xf32>
    %21 = arith.mulf %20, %17 : vector<16x256xf32>
    %22 = arith.select %19, %17, %21 : vector<16x256xi1>, vector<16x256xf32>
    %23 = arith.truncf %22 : vector<16x256xf32> to vector<16x256xbf16>
    %c0_14 = arith.constant 0 : index
    %c0_15 = arith.constant 0 : index
    %24 = vector.load %arg3[%c0_14, %c0_15] : memref<256x256xbf16, #tpu.memory_space<vmem>>, vector<256x256xbf16>
    %cst_16 = arith.constant dense<0.000000e+00> : vector<16x256xf32>
    %25 = tpu.matmul %23, %24, %cst_16 {dimension_numbers = #tpu.dot_dimension_numbers<[1], [0], [0], [1], [0, 0, 1, 1], [], []>} : vector<16x256xbf16>, vector<256x256xbf16>, vector<16x256xf32> -> vector<16x256xf32>
    %c0_17 = arith.constant 0 : index
    %c0_18 = arith.constant 0 : index
    %26 = vector.load %arg7[%c0_17, %c0_18] : memref<1x256xf32, #tpu.memory_space<vmem>>, vector<1x256xf32>
    %27 = vector.broadcast %26 : vector<1x256xf32> to vector<16x256xf32>
    %28 = arith.addf %25, %27 : vector<16x256xf32>
    %cst_19 = arith.constant 0.000000e+00 : f32
    %29 = vector.broadcast %cst_19 : f32 to vector<16x256xf32>
    %30 = arith.cmpf ogt, %28, %29 : vector<16x256xf32>
    %cst_20 = arith.constant 1.000000e-01 : f32
    %31 = vector.broadcast %cst_20 : f32 to vector<16x256xf32>
    %32 = arith.mulf %31, %28 : vector<16x256xf32>
    %33 = arith.select %30, %28, %32 : vector<16x256xi1>, vector<16x256xf32>
    %34 = arith.truncf %33 : vector<16x256xf32> to vector<16x256xbf16>
    %c0_21 = arith.constant 0 : index
    %c0_22 = arith.constant 0 : index
    %35 = vector.load %arg4[%c0_21, %c0_22] : memref<256x128xbf16, #tpu.memory_space<vmem>>, vector<256x128xbf16>
    %cst_23 = arith.constant dense<0.000000e+00> : vector<16x128xf32>
    %36 = tpu.matmul %34, %35, %cst_23 {dimension_numbers = #tpu.dot_dimension_numbers<[1], [0], [0], [1], [0, 0, 1, 1], [], []>} : vector<16x256xbf16>, vector<256x128xbf16>, vector<16x128xf32> -> vector<16x128xf32>
    %c0_24 = arith.constant 0 : index
    %c0_25 = arith.constant 0 : index
    %37 = vector.load %arg8[%c0_24, %c0_25] : memref<16x128xf32, #tpu.memory_space<vmem>>, vector<16x128xf32>
    tpu.vector_store %arg8[%c0_24, %c0_25], %36 {strides = array<i32>} : memref<16x128xf32, #tpu.memory_space<vmem>>, vector<16x128xf32>,
    return
  }
}

</mosaic_0001>

<llo_original>
// kernel: classifier_forward.1
$region0: #{classifier_forward.1}
  #allocation0 [shape = 'u32[]', space=smem, size = 0x4, offset = 0x4, fixed_abs, tag = 'smem constant byte address 0x4 - core index']
  #allocation1 [shape = 'u32[144,128]{1,0:T(1,128)}', space=vmem, size = 0x12000, scoped, tag = 'internal scratch']
  %s0 = inlined_call_operand.vmem [shape: f32[16,256], index: 0, kind: input, shape index: {}]
  %s1 = inlined_call_operand.hbm [shape: bf16[256,512], index: 1, kind: input, shape index: {}]
  %s2 = inlined_call_operand.hbm [shape: bf16[512,256], index: 2, kind: input, shape index: {}]
  %s3 = inlined_call_operand.hbm [shape: bf16[256,256], index: 3, kind: input, shape index: {}]
  %s4 = inlined_call_operand.hbm [shape: bf16[256,128], index: 4, kind: input, shape index: {}]
  %s5 = inlined_call_operand.vmem [shape: f32[1,512], index: 5, kind: input, shape index: {}]
  %s6 = inlined_call_operand.vmem [shape: f32[1,256], index: 6, kind: input, shape index: {}]
  %s7 = inlined_call_operand.vmem [shape: f32[1,256], index: 7, kind: input, shape index: {}]
  %s8 = inlined_call_operand.vmem [shape: f32[16,128], index: 8, kind: output, shape index: {}]
  %s9 = sld [smem:[#allocation0]]
  $region58: #{classifier_forward.1} parent=0
    _
  %s11 = ssub.s32 1, %s9
  %s12 = scalar_select 0, %s11, %s9
  $region1: #{classifier_forward.1} parent=0
    #allocation2 [shape = 'u8[262144]{0}', space=vmem, size = 0x40000, scoped, tag = 'input window, operand 1, single buffered']
    #allocation3 [shape = 's32[1]{0}', space=sflag, size = 0x4, scoped, tag = 'scoped memory for classifier_forward.1']
    #allocation4 [shape = 'u8[262144]{0}', space=vmem, size = 0x40000, scoped, tag = 'input window, operand 2, single buffered']
    #allocation5 [shape = 's32[1]{0}', space=sflag, size = 0x4, scoped, tag = 'scoped memory for classifier_forward.1']
    #allocation6 [shape = 'u8[131072]{0}', space=vmem, size = 0x20000, scoped, tag = 'input window, operand 3, single buffered']
    #allocation7 [shape = 'u8[65536]{0}', space=vmem, size = 0x10000, scoped, tag = 'input window, operand 4, single buffered']
    #allocation8 [shape = 's32[1]{0}', space=sflag, size = 0x4, scoped, tag = 'scoped memory for classifier_forward.1']
    %13 = vsyncpa [#allocation3], 0
    %14 = vsyncpa [#allocation5], 0
    %15 = vsyncpa [#allocation8], 0
    // Predicated region
    $region2: #{classifier_forward.1} parent=1 // pred_check
      _
    $region3: #{classifier_forward.1} parent=1 // pred_check_branch
      %17 = sbr.rel (0) target = $region5
    $region4: #{classifier_forward.1} parent=1 // pred_region
      _
    $region5: #{classifier_forward.1} parent=1 // pred_fallthru
      _
    // Predicated region
    $region6: #{classifier_forward.1} parent=1 // pred_check
      _
    $region7: #{classifier_forward.1} parent=1 // pred_check_branch
      %19 = sbr.rel (0) target = $region9
    $region8: #{classifier_forward.1} parent=1 // pred_region
      %s21 = ssub.s32 8192, 8192
      %22 = vsyncadd [#allocation3], %s21
      %s23 = sshll.u32 [#allocation2], 4
      %s24 = int_to_ptr.vmem [resolvable:$true] %s23
      %29 = dma.hbm_to_vmem [thread:$0]  %s1, 8192, %s24, [#allocation3], 256, 256, 16
    $region9: #{classifier_forward.1} parent=1 // pred_fallthru
      _
    // Predicated region
    $region10: #{classifier_forward.1} parent=1 // pred_check
      _
    $region11: #{classifier_forward.1} parent=1 // pred_check_branch
      %31 = sbr.rel (0) target = $region13
    $region12: #{classifier_forward.1} parent=1 // pred_region
      %s33 = ssub.s32 8192, 8192
      %34 = vsyncadd [#allocation5], %s33
      %s35 = sshll.u32 [#allocation4], 4
      %s36 = int_to_ptr.vmem [resolvable:$true] %s35
      %41 = dma.hbm_to_vmem [thread:$0]  %s2, 8192, %s36, [#allocation5], 128, 128, 8
    $region13: #{classifier_forward.1} parent=1 // pred_fallthru
      _
    // Predicated region
    $region14: #{classifier_forward.1} parent=1 // pred_check
      _
    $region15: #{classifier_forward.1} parent=1 // pred_check_branch
      %43 = sbr.rel (0) target = $region17
    $region16: #{classifier_forward.1} parent=1 // pred_region
      %s45 = ssub.s32 4096, 4096
      %46 = vsyncadd [#allocation5], %s45
      %s47 = sshll.u32 [#allocation6], 4
      %s48 = int_to_ptr.vmem [resolvable:$true] %s47
      %53 = dma.hbm_to_vmem [thread:$0]  %s3, 4096, %s48, [#allocation5], 128, 128, 8
    $region17: #{classifier_forward.1} parent=1 // pred_fallthru
      _
    // Predicated region
    $region18: #{classifier_forward.1} parent=1 // pred_check
      _
    $region19: #{classifier_forward.1} parent=1 // pred_check_branch
      %55 = sbr.rel (0) target = $region21
    $region20: #{classifier_forward.1} parent=1 // pred_region
      %s57 = ssub.s32 2048, 2048
      %58 = vsyncadd [#allocation8], %s57
      %s59 = sshll.u32 [#allocation7], 4
      %s60 = int_to_ptr.vmem [resolvable:$true] %s59
      %65 = dma.hbm_to_vmem [thread:$0]  %s4, 2048, %s60, [#allocation8], 64, 64, 4
    $region21: #{classifier_forward.1} parent=1 // pred_fallthru
      _
    // Predicated region
    $region22: #{classifier_forward.1} parent=1 // pred_check
      _
    $region23: #{classifier_forward.1} parent=1 // pred_check_branch
      %67 = sbr.rel (0) target = $region25
    $region24: #{classifier_forward.1} parent=1 // pred_region
      _
    $region25: #{classifier_forward.1} parent=1 // pred_fallthru
      _
    // Predicated region
    $region26: #{classifier_forward.1} parent=1 // pred_check
      _
    $region27: #{classifier_forward.1} parent=1 // pred_check_branch
      %69 = sbr.rel (0) target = $region29
    $region28: #{classifier_forward.1} parent=1 // pred_region
      _
    $region29: #{classifier_forward.1} parent=1 // pred_fallthru
      _
    // Predicated region
    $region30: #{classifier_forward.1} parent=1 // pred_check
      _
    $region31: #{classifier_forward.1} parent=1 // pred_check_branch
      %71 = sbr.rel (0) target = $region33
    $region32: #{classifier_forward.1} parent=1 // pred_region
      _
    $region33: #{classifier_forward.1} parent=1 // pred_fallthru
      _
    // Predicated region
    $region34: #{classifier_forward.1} parent=1 // pred_check
      _
    $region35: #{classifier_forward.1} parent=1 // pred_check_branch
      %73 = sbr.rel (0) target = $region37
    $region36: #{classifier_forward.1} parent=1 // pred_region
      %74 = dma.done [#allocation3], 8192
    $region37: #{classifier_forward.1} parent=1 // pred_fallthru
      _
    // Predicated region
    $region38: #{classifier_forward.1} parent=1 // pred_check
      _
    $region39: #{classifier_forward.1} parent=1 // pred_check_branch
      %76 = sbr.rel (0) target = $region41
    $region40: #{classifier_forward.1} parent=1 // pred_region
      %77 = dma.done [#allocation5], 8192
    $region41: #{classifier_forward.1} parent=1 // pred_fallthru
      _
    // Predicated region
    $region42: #{classifier_forward.1} parent=1 // pred_check
      _
    $region43: #{classifier_forward.1} parent=1 // pred_check_branch
      %79 = sbr.rel (0) target = $region45
    $region44: #{classifier_forward.1} parent=1 // pred_region
      %80 = dma.done [#allocation5], 4096
    $region45: #{classifier_forward.1} parent=1 // pred_fallthru
      _
    // Predicated region
    $region46: #{classifier_forward.1} parent=1 // pred_check
      _
    $region47: #{classifier_forward.1} parent=1 // pred_check_branch
      %82 = sbr.rel (0) target = $region49
    $region48: #{classifier_forward.1} parent=1 // pred_region
      %83 = dma.done [#allocation8], 2048
    $region49: #{classifier_forward.1} parent=1 // pred_fallthru
      _
    %v85 = vld [vmem:[%s0] sm:$0xff]
    %v86 = vld [vmem:[%s0 + $0x8] sm:$0xff]
    %v87 = vld [vmem:[%s0 + $0x10] sm:$0xff]
    %v88 = vld [vmem:[%s0 + $0x18] sm:$0xff]
    %v89 = vpack.c.bf16 %v87, %v85
    %v90 = vpack.c.bf16 %v88, %v86
    %v91 = vld [vmem:[#allocation2] sm:$0xff]
    %v92 = vld [vmem:[#allocation2 + $0x8] sm:$0xff]
    %v93 = vld [vmem:[#allocation2 + $0x10] sm:$0xff]
    %v94 = vld [vmem:[#allocation2 + $0x18] sm:$0xff]
    %v95 = vld [vmem:[#allocation2 + $0x20] sm:$0xff]
    %v96 = vld [vmem:[#allocation2 + $0x28] sm:$0xff]
    %v97 = vld [vmem:[#allocation2 + $0x30] sm:$0xff]
    %v98 = vld [vmem:[#allocation2 + $0x38] sm:$0xff]
    %v99 = vld [vmem:[#allocation2 + $0x40] sm:$0xff]
    %v100 = vld [vmem:[#allocation2 + $0x48] sm:$0xff]
    %v101 = vld [vmem:[#allocation2 + $0x50] sm:$0xff]
    %v102 = vld [vmem:[#allocation2 + $0x58] sm:$0xff]
    %v103 = vld [vmem:[#allocation2 + $0x60] sm:$0xff]
    %v104 = vld [vmem:[#allocation2 + $0x68] sm:$0xff]
    %v105 = vld [vmem:[#allocation2 + $0x70] sm:$0xff]
    %v106 = vld [vmem:[#allocation2 + $0x78] sm:$0xff]
    %v107 = vld [vmem:[#allocation2 + $0x80] sm:$0xff]
    %v108 = vld [vmem:[#allocation2 + $0x88] sm:$0xff]
    %v109 = vld [vmem:[#allocation2 + $0x90] sm:$0xff]
    %v110 = vld [vmem:[#allocation2 + $0x98] sm:$0xff]
    %v111 = vld [vmem:[#allocation2 + $0xa0] sm:$0xff]
    %v112 = vld [vmem:[#allocation2 + $0xa8] sm:$0xff]
    %v113 = vld [vmem:[#allocation2 + $0xb0] sm:$0xff]
    %v114 = vld [vmem:[#allocation2 + $0xb8] sm:$0xff]
    %v115 = vld [vmem:[#allocation2 + $0xc0] sm:$0xff]
    %v116 = vld [vmem:[#allocation2 + $0xc8] sm:$0xff]
    %v117 = vld [vmem:[#allocation2 + $0xd0] sm:$0xff]
    %v118 = vld [vmem:[#allocation2 + $0xd8] sm:$0xff]
    %v119 = vld [vmem:[#allocation2 + $0xe0] sm:$0xff]
    %v120 = vld [vmem:[#allocation2 + $0xe8] sm:$0xff]
    %v121 = vld [vmem:[#allocation2 + $0xf0] sm:$0xff]
    %v122 = vld [vmem:[#allocation2 + $0xf8] sm:$0xff]
    %v123 = vld [vmem:[#allocation2 + $0x100] sm:$0xff]
    %v124 = vld [vmem:[#allocation2 + $0x108] sm:$0xff]
    %v125 = vld [vmem:[#allocation2 + $0x110] sm:$0xff]
    %v126 = vld [vmem:[#allocation2 + $0x118] sm:$0xff]
    %v127 = vld [vmem:[#allocation2 + $0x120] sm:$0xff]
    %v128 = vld [vmem:[#allocation2 + $0x128] sm:$0xff]
    %v129 = vld [vmem:[#allocation2 + $0x130] sm:$0xff]
    %v130 = vld [vmem:[#allocation2 + $0x138] sm:$0xff]
    %v131 = vld [vmem:[#allocation2 + $0x140] sm:$0xff]
    %v132 = vld [vmem:[#allocation2 + $0x148] sm:$0xff]
    %v133 = vld [vmem:[#allocation2 + $0x150] sm:$0xff]
    %v134 = vld [vmem:[#allocation2 + $0x158] sm:$0xff]
    %v135 = vld [vmem:[#allocation2 + $0x160] sm:$0xff]
    %v136 = vld [vmem:[#allocation2 + $0x168] sm:$0xff]
    %v137 = vld [vmem:[#allocation2 + $0x170] sm:$0xff]
    %v138 = vld [vmem:[#allocation2 + $0x178] sm:$0xff]
    %v139 = vld [vmem:[#allocation2 + $0x180] sm:$0xff]
    %v140 = vld [vmem:[#allocation2 + $0x188] sm:$0xff]
    %v141 = vld [vmem:[#allocation2 + $0x190] sm:$0xff]
    %v142 = vld [vmem:[#allocation2 + $0x198] sm:$0xff]
    %v143 = vld [vmem:[#allocation2 + $0x1a0] sm:$0xff]
    %v144 = vld [vmem:[#allocation2 + $0x1a8] sm:$0xff]
    %v145 = vld [vmem:[#allocation2 + $0x1b0] sm:$0xff]
    %v146 = vld [vmem:[#allocation2 + $0x1b8] sm:$0xff]
    %v147 = vld [vmem:[#allocation2 + $0x1c0] sm:$0xff]
    %v148 = vld [vmem:[#allocation2 + $0x1c8] sm:$0xff]
    %v149 = vld [vmem:[#allocation2 + $0x1d0] sm:$0xff]
    %v150 = vld [vmem:[#allocation2 + $0x1d8] sm:$0xff]
    %v151 = vld [vmem:[#allocation2 + $0x1e0] sm:$0xff]
    %v152 = vld [vmem:[#allocation2 + $0x1e8] sm:$0xff]
    %v153 = vld [vmem:[#allocation2 + $0x1f0] sm:$0xff]
    %v154 = vld [vmem:[#allocation2 + $0x1f8] sm:$0xff]
    %v155 = vld [vmem:[%s5] sm:$0xf]
    %v157 = vlaneseq
    %v158 = vshrl.u32 %v157, 7
    %v159 = vsub.s32 0, %v158
    %v160 = vrot.slane %v155, %v159
    %v161 = vlaneseq
    %v162 = vshrl.u32 %v161, 7
    %v163 = vsub.s32 1, %v162
    %v164 = vrot.slane %v155, %v163
    %v165 = vlaneseq
    %v166 = vshrl.u32 %v165, 7
    %v167 = vsub.s32 2, %v166
    %v168 = vrot.slane %v155, %v167
    %v169 = vlaneseq
    %v170 = vshrl.u32 %v169, 7
    %v171 = vsub.s32 3, %v170
    %v172 = vrot.slane %v155, %v171
    %v241 = vunpack.c.l.b16 %v91
    %v242 = vunpack.c.h.b16 %v91
    %v243 = vunpack.c.l.b16 %v92
    %v244 = vunpack.c.h.b16 %v92
    %v245 = vunpack.c.l.b16 %v93
    %v246 = vunpack.c.h.b16 %v93
    %v247 = vunpack.c.l.b16 %v94
    %v248 = vunpack.c.h.b16 %v94
    %v249 = vunpack.c.l.b16 %v95
    %v250 = vunpack.c.h.b16 %v95
    %v251 = vunpack.c.l.b16 %v96
    %v252 = vunpack.c.h.b16 %v96
    %v253 = vunpack.c.l.b16 %v97
    %v254 = vunpack.c.h.b16 %v97
    %v255 = vunpack.c.l.b16 %v98
    %v256 = vunpack.c.h.b16 %v98
    %v257 = vunpack.c.l.b16 %v99
    %v258 = vunpack.c.h.b16 %v99
    %v259 = vunpack.c.l.b16 %v100
    %v260 = vunpack.c.h.b16 %v100
    %v261 = vunpack.c.l.b16 %v101
    %v262 = vunpack.c.h.b16 %v101
    %v263 = vunpack.c.l.b16 %v102
    %v264 = vunpack.c.h.b16 %v102
    %v265 = vunpack.c.l.b16 %v103
    %v266 = vunpack.c.h.b16 %v103
    %v267 = vunpack.c.l.b16 %v104
    %v268 = vunpack.c.h.b16 %v104
    %v269 = vunpack.c.l.b16 %v105
    %v270 = vunpack.c.h.b16 %v105
    %v271 = vunpack.c.l.b16 %v106
    %v272 = vunpack.c.h.b16 %v106
    %v273 = vunpack.c.l.b16 %v107
    %v274 = vunpack.c.h.b16 %v107
    %v275 = vunpack.c.l.b16 %v108
    %v276 = vunpack.c.h.b16 %v108
    %v277 = vunpack.c.l.b16 %v109
    %v278 = vunpack.c.h.b16 %v109
    %v279 = vunpack.c.l.b16 %v110
    %v280 = vunpack.c.h.b16 %v110
    %v281 = vunpack.c.l.b16 %v111
    %v282 = vunpack.c.h.b16 %v111
    %v283 = vunpack.c.l.b16 %v112
    %v284 = vunpack.c.h.b16 %v112
    %v285 = vunpack.c.l.b16 %v113
    %v286 = vunpack.c.h.b16 %v113
    %v287 = vunpack.c.l.b16 %v114
    %v288 = vunpack.c.h.b16 %v114
    %v289 = vunpack.c.l.b16 %v115
    %v290 = vunpack.c.h.b16 %v115
    %v291 = vunpack.c.l.b16 %v116
    %v292 = vunpack.c.h.b16 %v116
    %v293 = vunpack.c.l.b16 %v117
    %v294 = vunpack.c.h.b16 %v117
    %v295 = vunpack.c.l.b16 %v118
    %v296 = vunpack.c.h.b16 %v118
    %v297 = vunpack.c.l.b16 %v119
    %v298 = vunpack.c.h.b16 %v119
    %v299 = vunpack.c.l.b16 %v120
    %v300 = vunpack.c.h.b16 %v120
    %v301 = vunpack.c.l.b16 %v121
    %v302 = vunpack.c.h.b16 %v121
    %v303 = vunpack.c.l.b16 %v122
    %v304 = vunpack.c.h.b16 %v122
    %v305 = vunpack.c.l.b16 %v123
    %v306 = vunpack.c.h.b16 %v123
    %v307 = vunpack.c.l.b16 %v124
    %v308 = vunpack.c.h.b16 %v124
    %v309 = vunpack.c.l.b16 %v125
    %v310 = vunpack.c.h.b16 %v125
    %v311 = vunpack.c.l.b16 %v126
    %v312 = vunpack.c.h.b16 %v126
    %v313 = vunpack.c.l.b16 %v127
    %v314 = vunpack.c.h.b16 %v127
    %v315 = vunpack.c.l.b16 %v128
    %v316 = vunpack.c.h.b16 %v128
    %v317 = vunpack.c.l.b16 %v129
    %v318 = vunpack.c.h.b16 %v129
    %v319 = vunpack.c.l.b16 %v130
    %v320 = vunpack.c.h.b16 %v130
    %v321 = vunpack.c.l.b16 %v131
    %v322 = vunpack.c.h.b16 %v131
    %v323 = vunpack.c.l.b16 %v132
    %v324 = vunpack.c.h.b16 %v132
    %v325 = vunpack.c.l.b16 %v133
    %v326 = vunpack.c.h.b16 %v133
    %v327 = vunpack.c.l.b16 %v134
    %v328 = vunpack.c.h.b16 %v134
    %v329 = vunpack.c.l.b16 %v135
    %v330 = vunpack.c.h.b16 %v135
    %v331 = vunpack.c.l.b16 %v136
    %v332 = vunpack.c.h.b16 %v136
    %v333 = vunpack.c.l.b16 %v137
    %v334 = vunpack.c.h.b16 %v137
    %v335 = vunpack.c.l.b16 %v138
    %v336 = vunpack.c.h.b16 %v138
    %v337 = vunpack.c.l.b16 %v139
    %v338 = vunpack.c.h.b16 %v139
    %v339 = vunpack.c.l.b16 %v140
    %v340 = vunpack.c.h.b16 %v140
    %v341 = vunpack.c.l.b16 %v141
    %v342 = vunpack.c.h.b16 %v141
    %v343 = vunpack.c.l.b16 %v142
    %v344 = vunpack.c.h.b16 %v142
    %v345 = vunpack.c.l.b16 %v143
    %v346 = vunpack.c.h.b16 %v143
    %v347 = vunpack.c.l.b16 %v144
    %v348 = vunpack.c.h.b16 %v144
    %v349 = vunpack.c.l.b16 %v145
    %v350 = vunpack.c.h.b16 %v145
    %v351 = vunpack.c.l.b16 %v146
    %v352 = vunpack.c.h.b16 %v146
    %v353 = vunpack.c.l.b16 %v147
    %v354 = vunpack.c.h.b16 %v147
    %v355 = vunpack.c.l.b16 %v148
    %v356 = vunpack.c.h.b16 %v148
    %v357 = vunpack.c.l.b16 %v149
    %v358 = vunpack.c.h.b16 %v149
    %v359 = vunpack.c.l.b16 %v150
    %v360 = vunpack.c.h.b16 %v150
    %v361 = vunpack.c.l.b16 %v151
    %v362 = vunpack.c.h.b16 %v151
    %v363 = vunpack.c.l.b16 %v152
    %v364 = vunpack.c.h.b16 %v152
    %v365 = vunpack.c.l.b16 %v153
    %v366 = vunpack.c.h.b16 %v153
    %v367 = vunpack.c.l.b16 %v154
    %v368 = vunpack.c.h.b16 %v154
    %v369 = vpack.c.b16 %v245, %v241
    %v370 = vpack.c.b16 %v246, %v242
    %v371 = vpack.c.b16 %v247, %v243
    %v372 = vpack.c.b16 %v248, %v244
    %v373 = vpack.c.b16 %v253, %v249
    %v374 = vpack.c.b16 %v254, %v250
    %v375 = vpack.c.b16 %v255, %v251
    %v376 = vpack.c.b16 %v256, %v252
    %v377 = vpack.c.b16 %v261, %v257
    %v378 = vpack.c.b16 %v262, %v258
    %v379 = vpack.c.b16 %v263, %v259
    %v380 = vpack.c.b16 %v264, %v260
    %v381 = vpack.c.b16 %v269, %v265
    %v382 = vpack.c.b16 %v270, %v266
    %v383 = vpack.c.b16 %v271, %v267
    %v384 = vpack.c.b16 %v272, %v268
    %v385 = vpack.c.b16 %v277, %v273
    %v386 = vpack.c.b16 %v278, %v274
    %v387 = vpack.c.b16 %v279, %v275
    %v388 = vpack.c.b16 %v280, %v276
    %v389 = vpack.c.b16 %v285, %v281
    %v390 = vpack.c.b16 %v286, %v282
    %v391 = vpack.c.b16 %v287, %v283
    %v392 = vpack.c.b16 %v288, %v284
    %v393 = vpack.c.b16 %v293, %v289
    %v394 = vpack.c.b16 %v294, %v290
    %v395 = vpack.c.b16 %v295, %v291
    %v396 = vpack.c.b16 %v296, %v292
    %v397 = vpack.c.b16 %v301, %v297
    %v398 = vpack.c.b16 %v302, %v298
    %v399 = vpack.c.b16 %v303, %v299
    %v400 = vpack.c.b16 %v304, %v300
    %v401 = vpack.c.b16 %v309, %v305
    %v402 = vpack.c.b16 %v310, %v306
    %v403 = vpack.c.b16 %v311, %v307
    %v404 = vpack.c.b16 %v312, %v308
    %v405 = vpack.c.b16 %v317, %v313
    %v406 = vpack.c.b16 %v318, %v314
    %v407 = vpack.c.b16 %v319, %v315
    %v408 = vpack.c.b16 %v320, %v316
    %v409 = vpack.c.b16 %v325, %v321
    %v410 = vpack.c.b16 %v326, %v322
    %v411 = vpack.c.b16 %v327, %v323
    %v412 = vpack.c.b16 %v328, %v324
    %v413 = vpack.c.b16 %v333, %v329
    %v414 = vpack.c.b16 %v334, %v330
    %v415 = vpack.c.b16 %v335, %v331
    %v416 = vpack.c.b16 %v336, %v332
    %v417 = vpack.c.b16 %v341, %v337
    %v418 = vpack.c.b16 %v342, %v338
    %v419 = vpack.c.b16 %v343, %v339
    %v420 = vpack.c.b16 %v344, %v340
    %v421 = vpack.c.b16 %v349, %v345
    %v422 = vpack.c.b16 %v350, %v346
    %v423 = vpack.c.b16 %v351, %v347
    %v424 = vpack.c.b16 %v352, %v348
    %v425 = vpack.c.b16 %v357, %v353
    %v426 = vpack.c.b16 %v358, %v354
    %v427 = vpack.c.b16 %v359, %v355
    %v428 = vpack.c.b16 %v360, %v356
    %v429 = vpack.c.b16 %v365, %v361
    %v430 = vpack.c.b16 %v366, %v362
    %v431 = vpack.c.b16 %v367, %v363
    %v432 = vpack.c.b16 %v368, %v364
    %497 = vmatprep.subr.bf16.mxu0 %v398
    %498 = vmatpush1.bf16.msra.mxu0 %v397
    %499 = vmatprep.subr.bf16.mxu0 %v394
    %500 = vmatpush1.bf16.msra.mxu0 %v393
    %501 = vmatprep.subr.bf16.mxu0 %v390
    %502 = vmatpush1.bf16.msra.mxu0 %v389
    %503 = vmatprep.subr.bf16.mxu0 %v386
    %504 = vmatpush1.bf16.msra.mxu0 %v385
    %505 = vmatprep.subr.bf16.mxu0 %v382
    %506 = vmatpush1.bf16.msra.mxu0 %v381
    %507 = vmatprep.subr.bf16.mxu0 %v378
    %508 = vmatpush1.bf16.msra.mxu0 %v377
    %509 = vmatprep.subr.bf16.mxu0 %v374
    %510 = vmatpush1.bf16.msra.mxu0 %v373
    %511 = vmatprep.subr.bf16.mxu0 %v370
    %512 = vmatpush1.bf16.msra.mxu0 %v369
    %513 = vmatprep.subr.bf16.mxu0 %v430
    %514 = vmatpush2.bf16.msra.mxu0 %v429
    %515 = vmatprep.subr.bf16.mxu0 %v426
    %516 = vmatpush2.bf16.msra.mxu0 %v425
    %517 = vmatprep.subr.bf16.mxu0 %v422
    %518 = vmatpush2.bf16.msra.mxu0 %v421
    %519 = vmatprep.subr.bf16.mxu0 %v418
    %520 = vmatpush2.bf16.msra.mxu0 %v417
    %521 = vmatprep.subr.bf16.mxu0 %v414
    %522 = vmatpush2.bf16.msra.mxu0 %v413
    %523 = vmatprep.subr.bf16.mxu0 %v410
    %524 = vmatpush2.bf16.msra.mxu0 %v409
    %525 = vmatprep.subr.bf16.mxu0 %v406
    %526 = vmatpush2.bf16.msra.mxu0 %v405
    %527 = vmatprep.subr.bf16.mxu0 %v402
    %528 = vmatpush2.bf16.msra.mxu0 %v401
    %529 = vmatprep.mubr.bf16.mxu0 %v90
    %530 = vmatmul.mubr.bf16.gmra.mxu0 %v89
    %v531 = vpop.f32.mrf.mxu0
    %v532 = vadd.f32 %v160, %v531
    %v533 = vpop.f32.mrf.mxu0
    %v534 = vadd.f32 %v164, %v533
    %v535 = vpop.f32.mrf.mxu0
    %v536 = vadd.f32 %v160, %v535
    %v537 = vpop.f32.mrf.mxu0
    %v538 = vadd.f32 %v164, %v537
    %539 = vdwg.mxu0
    %540 = vmatprep.subr.bf16.mxu0 %v400
    %541 = vmatpush1.bf16.msra.mxu0 %v399
    %542 = vmatprep.subr.bf16.mxu0 %v396
    %543 = vmatpush1.bf16.msra.mxu0 %v395
    %544 = vmatprep.subr.bf16.mxu0 %v392
    %545 = vmatpush1.bf16.msra.mxu0 %v391
    %546 = vmatprep.subr.bf16.mxu0 %v388
    %547 = vmatpush1.bf16.msra.mxu0 %v387
    %548 = vmatprep.subr.bf16.mxu0 %v384
    %549 = vmatpush1.bf16.msra.mxu0 %v383
    %550 = vmatprep.subr.bf16.mxu0 %v380
    %551 = vmatpush1.bf16.msra.mxu0 %v379
    %552 = vmatprep.subr.bf16.mxu0 %v376
    %553 = vmatpush1.bf16.msra.mxu0 %v375
    %554 = vmatprep.subr.bf16.mxu0 %v372
    %555 = vmatpush1.bf16.msra.mxu0 %v371
    %556 = vmatprep.subr.bf16.mxu0 %v432
    %557 = vmatpush2.bf16.msra.mxu0 %v431
    %558 = vmatprep.subr.bf16.mxu0 %v428
    %559 = vmatpush2.bf16.msra.mxu0 %v427
    %560 = vmatprep.subr.bf16.mxu0 %v424
    %561 = vmatpush2.bf16.msra.mxu0 %v423
    %562 = vmatprep.subr.bf16.mxu0 %v420
    %563 = vmatpush2.bf16.msra.mxu0 %v419
    %564 = vmatprep.subr.bf16.mxu0 %v416
    %565 = vmatpush2.bf16.msra.mxu0 %v415
    %566 = vmatprep.subr.bf16.mxu0 %v412
    %567 = vmatpush2.bf16.msra.mxu0 %v411
    %568 = vmatprep.subr.bf16.mxu0 %v408
    %569 = vmatpush2.bf16.msra.mxu0 %v407
    %570 = vmatprep.subr.bf16.mxu0 %v404
    %571 = vmatpush2.bf16.msra.mxu0 %v403
    %572 = vmatprep.mubr.bf16.mxu0 %v90
    %573 = vmatmul.mubr.bf16.gmra.mxu0 %v89
    %v574 = vpop.f32.mrf.mxu0
    %v575 = vadd.f32 %v168, %v574
    %v576 = vpop.f32.mrf.mxu0
    %v577 = vadd.f32 %v172, %v576
    %v578 = vpop.f32.mrf.mxu0
    %v579 = vadd.f32 %v168, %v578
    %v580 = vpop.f32.mrf.mxu0
    %v581 = vadd.f32 %v172, %v580
    %582 = vdwg.mxu0
    %vm583 = vcmp.gt.f32.partialorder %v532, 0.0
    %vm584 = vcmp.gt.f32.partialorder %v534, 0.0
    %vm585 = vcmp.gt.f32.partialorder %v575, 0.0
    %vm586 = vcmp.gt.f32.partialorder %v577, 0.0
    %vm587 = vcmp.gt.f32.partialorder %v536, 0.0
    %vm588 = vcmp.gt.f32.partialorder %v538, 0.0
    %vm589 = vcmp.gt.f32.partialorder %v579, 0.0
    %vm590 = vcmp.gt.f32.partialorder %v581, 0.0
    %v591 = vmul.f32 %v532, 0.1
    %v592 = vmul.f32 %v534, 0.1
    %v593 = vmul.f32 %v575, 0.1
    %v594 = vmul.f32 %v577, 0.1
    %v595 = vmul.f32 %v536, 0.1
    %v596 = vmul.f32 %v538, 0.1
    %v597 = vmul.f32 %v579, 0.1
    %v598 = vmul.f32 %v581, 0.1
    %v599 = vsel %vm583, %v532, %v591
    %v600 = vsel %vm584, %v534, %v592
    %v601 = vsel %vm585, %v575, %v593
    %v602 = vsel %vm586, %v577, %v594
    %v603 = vsel %vm587, %v536, %v595
    %v604 = vsel %vm588, %v538, %v596
    %v605 = vsel %vm589, %v579, %v597
    %v606 = vsel %vm590, %v581, %v598
    %v607 = vpack.c.bf16 %v603, %v599
    %v608 = vpack.c.bf16 %v604, %v600
    %v609 = vpack.c.bf16 %v605, %v601
    %v610 = vpack.c.bf16 %v606, %v602
    %v611 = vld [vmem:[#allocation4] sm:$0xff]
    %v612 = vld [vmem:[#allocation4 + $0x8] sm:$0xff]
    %v613 = vld [vmem:[#allocation4 + $0x10] sm:$0xff]
    %v614 = vld [vmem:[#allocation4 + $0x18] sm:$0xff]
    %v615 = vld [vmem:[#allocation4 + $0x20] sm:$0xff]
    %v616 = vld [vmem:[#allocation4 + $0x28] sm:$0xff]
    %v617 = vld [vmem:[#allocation4 + $0x30] sm:$0xff]
    %v618 = vld [vmem:[#allocation4 + $0x38] sm:$0xff]
    %v619 = vld [vmem:[#allocation4 + $0x40] sm:$0xff]
    %v620 = vld [vmem:[#allocation4 + $0x48] sm:$0xff]
    %v621 = vld [vmem:[#allocation4 + $0x50] sm:$0xff]
    %v622 = vld [vmem:[#allocation4 + $0x58] sm:$0xff]
    %v623 = vld [vmem:[#allocation4 + $0x60] sm:$0xff]
    %v624 = vld [vmem:[#allocation4 + $0x68] sm:$0xff]
    %v625 = vld [vmem:[#allocation4 + $0x70] sm:$0xff]
    %v626 = vld [vmem:[#allocation4 + $0x78] sm:$0xff]
    %v627 = vld [vmem:[#allocation4 + $0x80] sm:$0xff]
    %v628 = vld [vmem:[#allocation4 + $0x88] sm:$0xff]
    %v629 = vld [vmem:[#allocation4 + $0x90] sm:$0xff]
    %v630 = vld [vmem:[#allocation4 + $0x98] sm:$0xff]
    %v631 = vld [vmem:[#allocation4 + $0xa0] sm:$0xff]
    %v632 = vld [vmem:[#allocation4 + $0xa8] sm:$0xff]
    %v633 = vld [vmem:[#allocation4 + $0xb0] sm:$0xff]
    %v634 = vld [vmem:[#allocation4 + $0xb8] sm:$0xff]
    %v635 = vld [vmem:[#allocation4 + $0xc0] sm:$0xff]
    %v636 = vld [vmem:[#allocation4 + $0xc8] sm:$0xff]
    %v637 = vld [vmem:[#allocation4 + $0xd0] sm:$0xff]
    %v638 = vld [vmem:[#allocation4 + $0xd8] sm:$0xff]
    %v639 = vld [vmem:[#allocation4 + $0xe0] sm:$0xff]
    %v640 = vld [vmem:[#allocation4 + $0xe8] sm:$0xff]
    %v641 = vld [vmem:[#allocation4 + $0xf0] sm:$0xff]
    %v642 = vld [vmem:[#allocation4 + $0xf8] sm:$0xff]
    %v643 = vld [vmem:[#allocation4 + $0x100] sm:$0xff]
    %v644 = vld [vmem:[#allocation4 + $0x108] sm:$0xff]
    %v645 = vld [vmem:[#allocation4 + $0x110] sm:$0xff]
    %v646 = vld [vmem:[#allocation4 + $0x118] sm:$0xff]
    %v647 = vld [vmem:[#allocation4 + $0x120] sm:$0xff]
    %v648 = vld [vmem:[#allocation4 + $0x128] sm:$0xff]
    %v649 = vld [vmem:[#allocation4 + $0x130] sm:$0xff]
    %v650 = vld [vmem:[#allocation4 + $0x138] sm:$0xff]
    %v651 = vld [vmem:[#allocation4 + $0x140] sm:$0xff]
    %v652 = vld [vmem:[#allocation4 + $0x148] sm:$0xff]
    %v653 = vld [vmem:[#allocation4 + $0x150] sm:$0xff]
    %v654 = vld [vmem:[#allocation4 + $0x158] sm:$0xff]
    %v655 = vld [vmem:[#allocation4 + $0x160] sm:$0xff]
    %v656 = vld [vmem:[#allocation4 + $0x168] sm:$0xff]
    %v657 = vld [vmem:[#allocation4 + $0x170] sm:$0xff]
    %v658 = vld [vmem:[#allocation4 + $0x178] sm:$0xff]
    %v659 = vld [vmem:[#allocation4 + $0x180] sm:$0xff]
    %v660 = vld [vmem:[#allocation4 + $0x188] sm:$0xff]
    %v661 = vld [vmem:[#allocation4 + $0x190] sm:$0xff]
    %v662 = vld [vmem:[#allocation4 + $0x198] sm:$0xff]
    %v663 = vld [vmem:[#allocation4 + $0x1a0] sm:$0xff]
    %v664 = vld [vmem:[#allocation4 + $0x1a8] sm:$0xff]
    %v665 = vld [vmem:[#allocation4 + $0x1b0] sm:$0xff]
    %v666 = vld [vmem:[#allocation4 + $0x1b8] sm:$0xff]
    %v667 = vld [vmem:[#allocation4 + $0x1c0] sm:$0xff]
    %v668 = vld [vmem:[#allocation4 + $0x1c8] sm:$0xff]
    %v669 = vld [vmem:[#allocation4 + $0x1d0] sm:$0xff]
    %v670 = vld [vmem:[#allocation4 + $0x1d8] sm:$0xff]
    %v671 = vld [vmem:[#allocation4 + $0x1e0] sm:$0xff]
    %v672 = vld [vmem:[#allocation4 + $0x1e8] sm:$0xff]
    %v673 = vld [vmem:[#allocation4 + $0x1f0] sm:$0xff]
    %v674 = vld [vmem:[#allocation4 + $0x1f8] sm:$0xff]
    %v675 = vld [vmem:[%s6] sm:$0x3]
    %v677 = vlaneseq
    %v678 = vshrl.u32 %v677, 7
    %v679 = vsub.s32 0, %v678
    %v680 = vrot.slane %v675, %v679
    %v681 = vlaneseq
    %v682 = vshrl.u32 %v681, 7
    %v683 = vsub.s32 1, %v682
    %v684 = vrot.slane %v675, %v683
    %v751 = vunpack.c.l.b16 %v611
    %v752 = vunpack.c.h.b16 %v611
    %v753 = vunpack.c.l.b16 %v612
    %v754 = vunpack.c.h.b16 %v612
    %v755 = vunpack.c.l.b16 %v613
    %v756 = vunpack.c.h.b16 %v613
    %v757 = vunpack.c.l.b16 %v614
    %v758 = vunpack.c.h.b16 %v614
    %v759 = vunpack.c.l.b16 %v615
    %v760 = vunpack.c.h.b16 %v615
    %v761 = vunpack.c.l.b16 %v616
    %v762 = vunpack.c.h.b16 %v616
    %v763 = vunpack.c.l.b16 %v617
    %v764 = vunpack.c.h.b16 %v617
    %v765 = vunpack.c.l.b16 %v618
    %v766 = vunpack.c.h.b16 %v618
    %v767 = vunpack.c.l.b16 %v619
    %v768 = vunpack.c.h.b16 %v619
    %v769 = vunpack.c.l.b16 %v620
    %v770 = vunpack.c.h.b16 %v620
    %v771 = vunpack.c.l.b16 %v621
    %v772 = vunpack.c.h.b16 %v621
    %v773 = vunpack.c.l.b16 %v622
    %v774 = vunpack.c.h.b16 %v622
    %v775 = vunpack.c.l.b16 %v623
    %v776 = vunpack.c.h.b16 %v623
    %v777 = vunpack.c.l.b16 %v624
    %v778 = vunpack.c.h.b16 %v624
    %v779 = vunpack.c.l.b16 %v625
    %v780 = vunpack.c.h.b16 %v625
    %v781 = vunpack.c.l.b16 %v626
    %v782 = vunpack.c.h.b16 %v626
    %v783 = vunpack.c.l.b16 %v627
    %v784 = vunpack.c.h.b16 %v627
    %v785 = vunpack.c.l.b16 %v628
    %v786 = vunpack.c.h.b16 %v628
    %v787 = vunpack.c.l.b16 %v629
    %v788 = vunpack.c.h.b16 %v629
    %v789 = vunpack.c.l.b16 %v630
    %v790 = vunpack.c.h.b16 %v630
    %v791 = vunpack.c.l.b16 %v631
    %v792 = vunpack.c.h.b16 %v631
    %v793 = vunpack.c.l.b16 %v632
    %v794 = vunpack.c.h.b16 %v632
    %v795 = vunpack.c.l.b16 %v633
    %v796 = vunpack.c.h.b16 %v633
    %v797 = vunpack.c.l.b16 %v634
    %v798 = vunpack.c.h.b16 %v634
    %v799 = vunpack.c.l.b16 %v635
    %v800 = vunpack.c.h.b16 %v635
    %v801 = vunpack.c.l.b16 %v636
    %v802 = vunpack.c.h.b16 %v636
    %v803 = vunpack.c.l.b16 %v637
    %v804 = vunpack.c.h.b16 %v637
    %v805 = vunpack.c.l.b16 %v638
    %v806 = vunpack.c.h.b16 %v638
    %v807 = vunpack.c.l.b16 %v639
    %v808 = vunpack.c.h.b16 %v639
    %v809 = vunpack.c.l.b16 %v640
    %v810 = vunpack.c.h.b16 %v640
    %v811 = vunpack.c.l.b16 %v641
    %v812 = vunpack.c.h.b16 %v641
    %v813 = vunpack.c.l.b16 %v642
    %v814 = vunpack.c.h.b16 %v642
    %v815 = vunpack.c.l.b16 %v643
    %v816 = vunpack.c.h.b16 %v643
    %v817 = vunpack.c.l.b16 %v644
    %v818 = vunpack.c.h.b16 %v644
    %v819 = vunpack.c.l.b16 %v645
    %v820 = vunpack.c.h.b16 %v645
    %v821 = vunpack.c.l.b16 %v646
    %v822 = vunpack.c.h.b16 %v646
    %v823 = vunpack.c.l.b16 %v647
    %v824 = vunpack.c.h.b16 %v647
    %v825 = vunpack.c.l.b16 %v648
    %v826 = vunpack.c.h.b16 %v648
    %v827 = vunpack.c.l.b16 %v649
    %v828 = vunpack.c.h.b16 %v649
    %v829 = vunpack.c.l.b16 %v650
    %v830 = vunpack.c.h.b16 %v650
    %v831 = vunpack.c.l.b16 %v651
    %v832 = vunpack.c.h.b16 %v651
    %v833 = vunpack.c.l.b16 %v652
    %v834 = vunpack.c.h.b16 %v652
    %v835 = vunpack.c.l.b16 %v653
    %v836 = vunpack.c.h.b16 %v653
    %v837 = vunpack.c.l.b16 %v654
    %v838 = vunpack.c.h.b16 %v654
    %v839 = vunpack.c.l.b16 %v655
    %v840 = vunpack.c.h.b16 %v655
    %v841 = vunpack.c.l.b16 %v656
    %v842 = vunpack.c.h.b16 %v656
    %v843 = vunpack.c.l.b16 %v657
    %v844 = vunpack.c.h.b16 %v657
    %v845 = vunpack.c.l.b16 %v658
    %v846 = vunpack.c.h.b16 %v658
    %v847 = vunpack.c.l.b16 %v659
    %v848 = vunpack.c.h.b16 %v659
    %v849 = vunpack.c.l.b16 %v660
    %v850 = vunpack.c.h.b16 %v660
    %v851 = vunpack.c.l.b16 %v661
    %v852 = vunpack.c.h.b16 %v661
    %v853 = vunpack.c.l.b16 %v662
    %v854 = vunpack.c.h.b16 %v662
    %v855 = vunpack.c.l.b16 %v663
    %v856 = vunpack.c.h.b16 %v663
    %v857 = vunpack.c.l.b16 %v664
    %v858 = vunpack.c.h.b16 %v664
    %v859 = vunpack.c.l.b16 %v665
    %v860 = vunpack.c.h.b16 %v665
    %v861 = vunpack.c.l.b16 %v666
    %v862 = vunpack.c.h.b16 %v666
    %v863 = vunpack.c.l.b16 %v667
    %v864 = vunpack.c.h.b16 %v667
    %v865 = vunpack.c.l.b16 %v668
    %v866 = vunpack.c.h.b16 %v668
    %v867 = vunpack.c.l.b16 %v669
    %v868 = vunpack.c.h.b16 %v669
    %v869 = vunpack.c.l.b16 %v670
    %v870 = vunpack.c.h.b16 %v670
    %v871 = vunpack.c.l.b16 %v671
    %v872 = vunpack.c.h.b16 %v671
    %v873 = vunpack.c.l.b16 %v672
    %v874 = vunpack.c.h.b16 %v672
    %v875 = vunpack.c.l.b16 %v673
    %v876 = vunpack.c.h.b16 %v673
    %v877 = vunpack.c.l.b16 %v674
    %v878 = vunpack.c.h.b16 %v674
    %v879 = vpack.c.b16 %v753, %v751
    %v880 = vpack.c.b16 %v754, %v752
    %v881 = vpack.c.b16 %v757, %v755
    %v882 = vpack.c.b16 %v758, %v756
    %v883 = vpack.c.b16 %v761, %v759
    %v884 = vpack.c.b16 %v762, %v760
    %v885 = vpack.c.b16 %v765, %v763
    %v886 = vpack.c.b16 %v766, %v764
    %v887 = vpack.c.b16 %v769, %v767
    %v888 = vpack.c.b16 %v770, %v768
    %v889 = vpack.c.b16 %v773, %v771
    %v890 = vpack.c.b16 %v774, %v772
    %v891 = vpack.c.b16 %v777, %v775
    %v892 = vpack.c.b16 %v778, %v776
    %v893 = vpack.c.b16 %v781, %v779
    %v894 = vpack.c.b16 %v782, %v780
    %v895 = vpack.c.b16 %v785, %v783
    %v896 = vpack.c.b16 %v786, %v784
    %v897 = vpack.c.b16 %v789, %v787
    %v898 = vpack.c.b16 %v790, %v788
    %v899 = vpack.c.b16 %v793, %v791
    %v900 = vpack.c.b16 %v794, %v792
    %v901 = vpack.c.b16 %v797, %v795
    %v902 = vpack.c.b16 %v798, %v796
    %v903 = vpack.c.b16 %v801, %v799
    %v904 = vpack.c.b16 %v802, %v800
    %v905 = vpack.c.b16 %v805, %v803
    %v906 = vpack.c.b16 %v806, %v804
    %v907 = vpack.c.b16 %v809, %v807
    %v908 = vpack.c.b16 %v810, %v808
    %v909 = vpack.c.b16 %v813, %v811
    %v910 = vpack.c.b16 %v814, %v812
    %v911 = vpack.c.b16 %v817, %v815
    %v912 = vpack.c.b16 %v818, %v816
    %v913 = vpack.c.b16 %v821, %v819
    %v914 = vpack.c.b16 %v822, %v820
    %v915 = vpack.c.b16 %v825, %v823
    %v916 = vpack.c.b16 %v826, %v824
    %v917 = vpack.c.b16 %v829, %v827
    %v918 = vpack.c.b16 %v830, %v828
    %v919 = vpack.c.b16 %v833, %v831
    %v920 = vpack.c.b16 %v834, %v832
    %v921 = vpack.c.b16 %v837, %v835
    %v922 = vpack.c.b16 %v838, %v836
    %v923 = vpack.c.b16 %v841, %v839
    %v924 = vpack.c.b16 %v842, %v840
    %v925 = vpack.c.b16 %v845, %v843
    %v926 = vpack.c.b16 %v846, %v844
    %v927 = vpack.c.b16 %v849, %v847
    %v928 = vpack.c.b16 %v850, %v848
    %v929 = vpack.c.b16 %v853, %v851
    %v930 = vpack.c.b16 %v854, %v852
    %v931 = vpack.c.b16 %v857, %v855
    %v932 = vpack.c.b16 %v858, %v856
    %v933 = vpack.c.b16 %v861, %v859
    %v934 = vpack.c.b16 %v862, %v860
    %v935 = vpack.c.b16 %v865, %v863
    %v936 = vpack.c.b16 %v866, %v864
    %v937 = vpack.c.b16 %v869, %v867
    %v938 = vpack.c.b16 %v870, %v868
    %v939 = vpack.c.b16 %v873, %v871
    %v940 = vpack.c.b16 %v874, %v872
    %v941 = vpack.c.b16 %v877, %v875
    %v942 = vpack.c.b16 %v878, %v876
    %1007 = vmatprep.subr.bf16.mxu0 %v894
    %1008 = vmatpush1.bf16.msra.mxu0 %v893
    %1009 = vmatprep.subr.bf16.mxu0 %v892
    %1010 = vmatpush1.bf16.msra.mxu0 %v891
    %1011 = vmatprep.subr.bf16.mxu0 %v890
    %1012 = vmatpush1.bf16.msra.mxu0 %v889
    %1013 = vmatprep.subr.bf16.mxu0 %v888
    %1014 = vmatpush1.bf16.msra.mxu0 %v887
    %1015 = vmatprep.subr.bf16.mxu0 %v886
    %1016 = vmatpush1.bf16.msra.mxu0 %v885
    %1017 = vmatprep.subr.bf16.mxu0 %v884
    %1018 = vmatpush1.bf16.msra.mxu0 %v883
    %1019 = vmatprep.subr.bf16.mxu0 %v882
    %1020 = vmatpush1.bf16.msra.mxu0 %v881
    %1021 = vmatprep.subr.bf16.mxu0 %v880
    %1022 = vmatpush1.bf16.msra.mxu0 %v879
    %1023 = vmatprep.subr.bf16.mxu0 %v910
    %1024 = vmatpush2.bf16.msra.mxu0 %v909
    %1025 = vmatprep.subr.bf16.mxu0 %v908
    %1026 = vmatpush2.bf16.msra.mxu0 %v907
    %1027 = vmatprep.subr.bf16.mxu0 %v906
    %1028 = vmatpush2.bf16.msra.mxu0 %v905
    %1029 = vmatprep.subr.bf16.mxu0 %v904
    %1030 = vmatpush2.bf16.msra.mxu0 %v903
    %1031 = vmatprep.subr.bf16.mxu0 %v902
    %1032 = vmatpush2.bf16.msra.mxu0 %v901
    %1033 = vmatprep.subr.bf16.mxu0 %v900
    %1034 = vmatpush2.bf16.msra.mxu0 %v899
    %1035 = vmatprep.subr.bf16.mxu0 %v898
    %1036 = vmatpush2.bf16.msra.mxu0 %v897
    %1037 = vmatprep.subr.bf16.mxu0 %v896
    %1038 = vmatpush2.bf16.msra.mxu0 %v895
    %1039 = vmatprep.mubr.bf16.mxu0 %v608
    %1040 = vmatmul.mubr.bf16.gmra.mxu0 %v607
    %v1041 = vpop.f32.mrf.mxu0
    %v1042 = vadd.f32 %v680, %v1041
    %v1043 = vpop.f32.mrf.mxu0
    %v1044 = vadd.f32 %v684, %v1043
    %v1045 = vpop.f32.mrf.mxu0
    %v1046 = vadd.f32 %v680, %v1045
    %v1047 = vpop.f32.mrf.mxu0
    %v1048 = vadd.f32 %v684, %v1047
    %1049 = vdwg.mxu0
    %1050 = vmatprep.subr.bf16.mxu0 %v926
    %1051 = vmatpush1.bf16.msra.mxu0 %v925
    %1052 = vmatprep.subr.bf16.mxu0 %v924
    %1053 = vmatpush1.bf16.msra.mxu0 %v923
    %1054 = vmatprep.subr.bf16.mxu0 %v922
    %1055 = vmatpush1.bf16.msra.mxu0 %v921
    %1056 = vmatprep.subr.bf16.mxu0 %v920
    %1057 = vmatpush1.bf16.msra.mxu0 %v919
    %1058 = vmatprep.subr.bf16.mxu0 %v918
    %1059 = vmatpush1.bf16.msra.mxu0 %v917
    %1060 = vmatprep.subr.bf16.mxu0 %v916
    %1061 = vmatpush1.bf16.msra.mxu0 %v915
    %1062 = vmatprep.subr.bf16.mxu0 %v914
    %1063 = vmatpush1.bf16.msra.mxu0 %v913
    %1064 = vmatprep.subr.bf16.mxu0 %v912
    %1065 = vmatpush1.bf16.msra.mxu0 %v911
    %1066 = vmatprep.subr.bf16.mxu0 %v942
    %1067 = vmatpush2.bf16.msra.mxu0 %v941
    %1068 = vmatprep.subr.bf16.mxu0 %v940
    %1069 = vmatpush2.bf16.msra.mxu0 %v939
    %1070 = vmatprep.subr.bf16.mxu0 %v938
    %1071 = vmatpush2.bf16.msra.mxu0 %v937
    %1072 = vmatprep.subr.bf16.mxu0 %v936
    %1073 = vmatpush2.bf16.msra.mxu0 %v935
    %1074 = vmatprep.subr.bf16.mxu0 %v934
    %1075 = vmatpush2.bf16.msra.mxu0 %v933
    %1076 = vmatprep.subr.bf16.mxu0 %v932
    %1077 = vmatpush2.bf16.msra.mxu0 %v931
    %1078 = vmatprep.subr.bf16.mxu0 %v930
    %1079 = vmatpush2.bf16.msra.mxu0 %v929
    %1080 = vmatprep.subr.bf16.mxu0 %v928
    %1081 = vmatpush2.bf16.msra.mxu0 %v927
    %1082 = vmatprep.mubr.bf16.mxu0 %v610
    %1083 = vmatmul.mubr.bf16.gmra.mxu0 %v609
    %v1084 = vpop.f32.mrf.mxu0
    %v1085 = vadd.f32 %v1042, %v1084
    %v1086 = vpop.f32.mrf.mxu0
    %v1087 = vadd.f32 %v1044, %v1086
    %v1088 = vpop.f32.mrf.mxu0
    %v1089 = vadd.f32 %v1046, %v1088
    %v1090 = vpop.f32.mrf.mxu0
    %v1091 = vadd.f32 %v1048, %v1090
    %1092 = vdwg.mxu0
    %vm1093 = vcmp.gt.f32.partialorder %v1085, 0.0
    %vm1094 = vcmp.gt.f32.partialorder %v1087, 0.0
    %vm1095 = vcmp.gt.f32.partialorder %v1089, 0.0
    %vm1096 = vcmp.gt.f32.partialorder %v1091, 0.0
    %v1097 = vmul.f32 %v1085, 0.1
    %v1098 = vmul.f32 %v1087, 0.1
    %v1099 = vmul.f32 %v1089, 0.1
    %v1100 = vmul.f32 %v1091, 0.1
    %v1101 = vsel %vm1093, %v1085, %v1097
    %v1102 = vsel %vm1094, %v1087, %v1098
    %v1103 = vsel %vm1095, %v1089, %v1099
    %v1104 = vsel %vm1096, %v1091, %v1100
    %v1105 = vpack.c.bf16 %v1103, %v1101
    %v1106 = vpack.c.bf16 %v1104, %v1102
    %v1107 = vld [vmem:[#allocation6] sm:$0xff]
    %v1108 = vld [vmem:[#allocation6 + $0x8] sm:$0xff]
    %v1109 = vld [vmem:[#allocation6 + $0x10] sm:$0xff]
    %v1110 = vld [vmem:[#allocation6 + $0x18] sm:$0xff]
    %v1111 = vld [vmem:[#allocation6 + $0x20] sm:$0xff]
    %v1112 = vld [vmem:[#allocation6 + $0x28] sm:$0xff]
    %v1113 = vld [vmem:[#allocation6 + $0x30] sm:$0xff]
    %v1114 = vld [vmem:[#allocation6 + $0x38] sm:$0xff]
    %v1115 = vld [vmem:[#allocation6 + $0x40] sm:$0xff]
    %v1116 = vld [vmem:[#allocation6 + $0x48] sm:$0xff]
    %v1117 = vld [vmem:[#allocation6 + $0x50] sm:$0xff]
    %v1118 = vld [vmem:[#allocation6 + $0x58] sm:$0xff]
    %v1119 = vld [vmem:[#allocation6 + $0x60] sm:$0xff]
    %v1120 = vld [vmem:[#allocation6 + $0x68] sm:$0xff]
    %v1121 = vld [vmem:[#allocation6 + $0x70] sm:$0xff]
    %v1122 = vld [vmem:[#allocation6 + $0x78] sm:$0xff]
    %v1123 = vld [vmem:[#allocation6 + $0x80] sm:$0xff]
    %v1124 = vld [vmem:[#allocation6 + $0x88] sm:$0xff]
    %v1125 = vld [vmem:[#allocation6 + $0x90] sm:$0xff]
    %v1126 = vld [vmem:[#allocation6 + $0x98] sm:$0xff]
    %v1127 = vld [vmem:[#allocation6 + $0xa0] sm:$0xff]
    %v1128 = vld [vmem:[#allocation6 + $0xa8] sm:$0xff]
    %v1129 = vld [vmem:[#allocation6 + $0xb0] sm:$0xff]
    %v1130 = vld [vmem:[#allocation6 + $0xb8] sm:$0xff]
    %v1131 = vld [vmem:[#allocation6 + $0xc0] sm:$0xff]
    %v1132 = vld [vmem:[#allocation6 + $0xc8] sm:$0xff]
    %v1133 = vld [vmem:[#allocation6 + $0xd0] sm:$0xff]
    %v1134 = vld [vmem:[#allocation6 + $0xd8] sm:$0xff]
    %v1135 = vld [vmem:[#allocation6 + $0xe0] sm:$0xff]
    %v1136 = vld [vmem:[#allocation6 + $0xe8] sm:$0xff]
    %v1137 = vld [vmem:[#allocation6 + $0xf0] sm:$0xff]
    %v1138 = vld [vmem:[#allocation6 + $0xf8] sm:$0xff]
    %v1139 = vld [vmem:[%s7] sm:$0x3]
    %v1141 = vlaneseq
    %v1142 = vshrl.u32 %v1141, 7
    %v1143 = vsub.s32 0, %v1142
    %v1144 = vrot.slane %v1139, %v1143
    %v1145 = vlaneseq
    %v1146 = vshrl.u32 %v1145, 7
    %v1147 = vsub.s32 1, %v1146
    %v1148 = vrot.slane %v1139, %v1147
    %v1183 = vunpack.c.l.b16 %v1107
    %v1184 = vunpack.c.h.b16 %v1107
    %v1185 = vunpack.c.l.b16 %v1108
    %v1186 = vunpack.c.h.b16 %v1108
    %v1187 = vunpack.c.l.b16 %v1109
    %v1188 = vunpack.c.h.b16 %v1109
    %v1189 = vunpack.c.l.b16 %v1110
    %v1190 = vunpack.c.h.b16 %v1110
    %v1191 = vunpack.c.l.b16 %v1111
    %v1192 = vunpack.c.h.b16 %v1111
    %v1193 = vunpack.c.l.b16 %v1112
    %v1194 = vunpack.c.h.b16 %v1112
    %v1195 = vunpack.c.l.b16 %v1113
    %v1196 = vunpack.c.h.b16 %v1113
    %v1197 = vunpack.c.l.b16 %v1114
    %v1198 = vunpack.c.h.b16 %v1114
    %v1199 = vunpack.c.l.b16 %v1115
    %v1200 = vunpack.c.h.b16 %v1115
    %v1201 = vunpack.c.l.b16 %v1116
    %v1202 = vunpack.c.h.b16 %v1116
    %v1203 = vunpack.c.l.b16 %v1117
    %v1204 = vunpack.c.h.b16 %v1117
    %v1205 = vunpack.c.l.b16 %v1118
    %v1206 = vunpack.c.h.b16 %v1118
    %v1207 = vunpack.c.l.b16 %v1119
    %v1208 = vunpack.c.h.b16 %v1119
    %v1209 = vunpack.c.l.b16 %v1120
    %v1210 = vunpack.c.h.b16 %v1120
    %v1211 = vunpack.c.l.b16 %v1121
    %v1212 = vunpack.c.h.b16 %v1121
    %v1213 = vunpack.c.l.b16 %v1122
    %v1214 = vunpack.c.h.b16 %v1122
    %v1215 = vunpack.c.l.b16 %v1123
    %v1216 = vunpack.c.h.b16 %v1123
    %v1217 = vunpack.c.l.b16 %v1124
    %v1218 = vunpack.c.h.b16 %v1124
    %v1219 = vunpack.c.l.b16 %v1125
    %v1220 = vunpack.c.h.b16 %v1125
    %v1221 = vunpack.c.l.b16 %v1126
    %v1222 = vunpack.c.h.b16 %v1126
    %v1223 = vunpack.c.l.b16 %v1127
    %v1224 = vunpack.c.h.b16 %v1127
    %v1225 = vunpack.c.l.b16 %v1128
    %v1226 = vunpack.c.h.b16 %v1128
    %v1227 = vunpack.c.l.b16 %v1129
    %v1228 = vunpack.c.h.b16 %v1129
    %v1229 = vunpack.c.l.b16 %v1130
    %v1230 = vunpack.c.h.b16 %v1130
    %v1231 = vunpack.c.l.b16 %v1131
    %v1232 = vunpack.c.h.b16 %v1131
    %v1233 = vunpack.c.l.b16 %v1132
    %v1234 = vunpack.c.h.b16 %v1132
    %v1235 = vunpack.c.l.b16 %v1133
    %v1236 = vunpack.c.h.b16 %v1133
    %v1237 = vunpack.c.l.b16 %v1134
    %v1238 = vunpack.c.h.b16 %v1134
    %v1239 = vunpack.c.l.b16 %v1135
    %v1240 = vunpack.c.h.b16 %v1135
    %v1241 = vunpack.c.l.b16 %v1136
    %v1242 = vunpack.c.h.b16 %v1136
    %v1243 = vunpack.c.l.b16 %v1137
    %v1244 = vunpack.c.h.b16 %v1137
    %v1245 = vunpack.c.l.b16 %v1138
    %v1246 = vunpack.c.h.b16 %v1138
    %v1247 = vpack.c.b16 %v1185, %v1183
    %v1248 = vpack.c.b16 %v1186, %v1184
    %v1249 = vpack.c.b16 %v1189, %v1187
    %v1250 = vpack.c.b16 %v1190, %v1188
    %v1251 = vpack.c.b16 %v1193, %v1191
    %v1252 = vpack.c.b16 %v1194, %v1192
    %v1253 = vpack.c.b16 %v1197, %v1195
    %v1254 = vpack.c.b16 %v1198, %v1196
    %v1255 = vpack.c.b16 %v1201, %v1199
    %v1256 = vpack.c.b16 %v1202, %v1200
    %v1257 = vpack.c.b16 %v1205, %v1203
    %v1258 = vpack.c.b16 %v1206, %v1204
    %v1259 = vpack.c.b16 %v1209, %v1207
    %v1260 = vpack.c.b16 %v1210, %v1208
    %v1261 = vpack.c.b16 %v1213, %v1211
    %v1262 = vpack.c.b16 %v1214, %v1212
    %v1263 = vpack.c.b16 %v1217, %v1215
    %v1264 = vpack.c.b16 %v1218, %v1216
    %v1265 = vpack.c.b16 %v1221, %v1219
    %v1266 = vpack.c.b16 %v1222, %v1220
    %v1267 = vpack.c.b16 %v1225, %v1223
    %v1268 = vpack.c.b16 %v1226, %v1224
    %v1269 = vpack.c.b16 %v1229, %v1227
    %v1270 = vpack.c.b16 %v1230, %v1228
    %v1271 = vpack.c.b16 %v1233, %v1231
    %v1272 = vpack.c.b16 %v1234, %v1232
    %v1273 = vpack.c.b16 %v1237, %v1235
    %v1274 = vpack.c.b16 %v1238, %v1236
    %v1275 = vpack.c.b16 %v1241, %v1239
    %v1276 = vpack.c.b16 %v1242, %v1240
    %v1277 = vpack.c.b16 %v1245, %v1243
    %v1278 = vpack.c.b16 %v1246, %v1244
    %1311 = vmatprep.subr.bf16.mxu0 %v1262
    %1312 = vmatpush1.bf16.msra.mxu0 %v1261
    %1313 = vmatprep.subr.bf16.mxu0 %v1260
    %1314 = vmatpush1.bf16.msra.mxu0 %v1259
    %1315 = vmatprep.subr.bf16.mxu0 %v1258
    %1316 = vmatpush1.bf16.msra.mxu0 %v1257
    %1317 = vmatprep.subr.bf16.mxu0 %v1256
    %1318 = vmatpush1.bf16.msra.mxu0 %v1255
    %1319 = vmatprep.subr.bf16.mxu0 %v1254
    %1320 = vmatpush1.bf16.msra.mxu0 %v1253
    %1321 = vmatprep.subr.bf16.mxu0 %v1252
    %1322 = vmatpush1.bf16.msra.mxu0 %v1251
    %1323 = vmatprep.subr.bf16.mxu0 %v1250
    %1324 = vmatpush1.bf16.msra.mxu0 %v1249
    %1325 = vmatprep.subr.bf16.mxu0 %v1248
    %1326 = vmatpush1.bf16.msra.mxu0 %v1247
    %1327 = vmatprep.subr.bf16.mxu0 %v1278
    %1328 = vmatpush2.bf16.msra.mxu0 %v1277
    %1329 = vmatprep.subr.bf16.mxu0 %v1276
    %1330 = vmatpush2.bf16.msra.mxu0 %v1275
    %1331 = vmatprep.subr.bf16.mxu0 %v1274
    %1332 = vmatpush2.bf16.msra.mxu0 %v1273
    %1333 = vmatprep.subr.bf16.mxu0 %v1272
    %1334 = vmatpush2.bf16.msra.mxu0 %v1271
    %1335 = vmatprep.subr.bf16.mxu0 %v1270
    %1336 = vmatpush2.bf16.msra.mxu0 %v1269
    %1337 = vmatprep.subr.bf16.mxu0 %v1268
    %1338 = vmatpush2.bf16.msra.mxu0 %v1267
    %1339 = vmatprep.subr.bf16.mxu0 %v1266
    %1340 = vmatpush2.bf16.msra.mxu0 %v1265
    %1341 = vmatprep.subr.bf16.mxu0 %v1264
    %1342 = vmatpush2.bf16.msra.mxu0 %v1263
    %1343 = vmatprep.mubr.bf16.mxu0 %v1106
    %1344 = vmatmul.mubr.bf16.gmra.mxu0 %v1105
    %v1345 = vpop.f32.mrf.mxu0
    %v1346 = vadd.f32 %v1144, %v1345
    %v1347 = vpop.f32.mrf.mxu0
    %v1348 = vadd.f32 %v1148, %v1347
    %v1349 = vpop.f32.mrf.mxu0
    %v1350 = vadd.f32 %v1144, %v1349
    %v1351 = vpop.f32.mrf.mxu0
    %v1352 = vadd.f32 %v1148, %v1351
    %1353 = vdwg.mxu0
    %vm1354 = vcmp.gt.f32.partialorder %v1346, 0.0
    %vm1355 = vcmp.gt.f32.partialorder %v1348, 0.0
    %vm1356 = vcmp.gt.f32.partialorder %v1350, 0.0
    %vm1357 = vcmp.gt.f32.partialorder %v1352, 0.0
    %v1358 = vmul.f32 %v1346, 0.1
    %v1359 = vmul.f32 %v1348, 0.1
    %v1360 = vmul.f32 %v1350, 0.1
    %v1361 = vmul.f32 %v1352, 0.1
    %v1362 = vsel %vm1354, %v1346, %v1358
    %v1363 = vsel %vm1355, %v1348, %v1359
    %v1364 = vsel %vm1356, %v1350, %v1360
    %v1365 = vsel %vm1357, %v1352, %v1361
    %v1366 = vpack.c.bf16 %v1364, %v1362
    %v1367 = vpack.c.bf16 %v1365, %v1363
    %v1368 = vld [vmem:[#allocation7] sm:$0xf]
    %v1369 = vld [vmem:[#allocation7 + $0x4] sm:$0xf]
    %v1370 = vld [vmem:[#allocation7 + $0x8] sm:$0xf]
    %v1371 = vld [vmem:[#allocation7 + $0xc] sm:$0xf]
    %v1372 = vld [vmem:[#allocation7 + $0x10] sm:$0xf]
    %v1373 = vld [vmem:[#allocation7 + $0x14] sm:$0xf]
    %v1374 = vld [vmem:[#allocation7 + $0x18] sm:$0xf]
    %v1375 = vld [vmem:[#allocation7 + $0x1c] sm:$0xf]
    %v1376 = vld [vmem:[#allocation7 + $0x20] sm:$0xf]
    %v1377 = vld [vmem:[#allocation7 + $0x24] sm:$0xf]
    %v1378 = vld [vmem:[#allocation7 + $0x28] sm:$0xf]
    %v1379 = vld [vmem:[#allocation7 + $0x2c] sm:$0xf]
    %v1380 = vld [vmem:[#allocation7 + $0x30] sm:$0xf]
    %v1381 = vld [vmem:[#allocation7 + $0x34] sm:$0xf]
    %v1382 = vld [vmem:[#allocation7 + $0x38] sm:$0xf]
    %v1383 = vld [vmem:[#allocation7 + $0x3c] sm:$0xf]
    %v1384 = vld [vmem:[#allocation7 + $0x40] sm:$0xf]
    %v1385 = vld [vmem:[#allocation7 + $0x44] sm:$0xf]
    %v1386 = vld [vmem:[#allocation7 + $0x48] sm:$0xf]
    %v1387 = vld [vmem:[#allocation7 + $0x4c] sm:$0xf]
    %v1388 = vld [vmem:[#allocation7 + $0x50] sm:$0xf]
    %v1389 = vld [vmem:[#allocation7 + $0x54] sm:$0xf]
    %v1390 = vld [vmem:[#allocation7 + $0x58] sm:$0xf]
    %v1391 = vld [vmem:[#allocation7 + $0x5c] sm:$0xf]
    %v1392 = vld [vmem:[#allocation7 + $0x60] sm:$0xf]
    %v1393 = vld [vmem:[#allocation7 + $0x64] sm:$0xf]
    %v1394 = vld [vmem:[#allocation7 + $0x68] sm:$0xf]
    %v1395 = vld [vmem:[#allocation7 + $0x6c] sm:$0xf]
    %v1396 = vld [vmem:[#allocation7 + $0x70] sm:$0xf]
    %v1397 = vld [vmem:[#allocation7 + $0x74] sm:$0xf]
    %v1398 = vld [vmem:[#allocation7 + $0x78] sm:$0xf]
    %v1399 = vld [vmem:[#allocation7 + $0x7c] sm:$0xf]
    %v1432 = vunpack.c.l.b16 %v1368
    %v1433 = vunpack.c.l.b16 %v1369
    %v1434 = vunpack.c.l.b16 %v1370
    %v1435 = vunpack.c.l.b16 %v1371
    %v1436 = vunpack.c.l.b16 %v1372
    %v1437 = vunpack.c.l.b16 %v1373
    %v1438 = vunpack.c.l.b16 %v1374
    %v1439 = vunpack.c.l.b16 %v1375
    %v1440 = vunpack.c.l.b16 %v1376
    %v1441 = vunpack.c.l.b16 %v1377
    %v1442 = vunpack.c.l.b16 %v1378
    %v1443 = vunpack.c.l.b16 %v1379
    %v1444 = vunpack.c.l.b16 %v1380
    %v1445 = vunpack.c.l.b16 %v1381
    %v1446 = vunpack.c.l.b16 %v1382
    %v1447 = vunpack.c.l.b16 %v1383
    %v1448 = vunpack.c.l.b16 %v1384
    %v1449 = vunpack.c.l.b16 %v1385
    %v1450 = vunpack.c.l.b16 %v1386
    %v1451 = vunpack.c.l.b16 %v1387
    %v1452 = vunpack.c.l.b16 %v1388
    %v1453 = vunpack.c.l.b16 %v1389
    %v1454 = vunpack.c.l.b16 %v1390
    %v1455 = vunpack.c.l.b16 %v1391
    %v1456 = vunpack.c.l.b16 %v1392
    %v1457 = vunpack.c.l.b16 %v1393
    %v1458 = vunpack.c.l.b16 %v1394
    %v1459 = vunpack.c.l.b16 %v1395
    %v1460 = vunpack.c.l.b16 %v1396
    %v1461 = vunpack.c.l.b16 %v1397
    %v1462 = vunpack.c.l.b16 %v1398
    %v1463 = vunpack.c.l.b16 %v1399
    %v1464 = vpack.c.b16 %v1433, %v1432
    %v1465 = vpack.c.b16 %v1435, %v1434
    %v1466 = vpack.c.b16 %v1437, %v1436
    %v1467 = vpack.c.b16 %v1439, %v1438
    %v1468 = vpack.c.b16 %v1441, %v1440
    %v1469 = vpack.c.b16 %v1443, %v1442
    %v1470 = vpack.c.b16 %v1445, %v1444
    %v1471 = vpack.c.b16 %v1447, %v1446
    %v1472 = vpack.c.b16 %v1449, %v1448
    %v1473 = vpack.c.b16 %v1451, %v1450
    %v1474 = vpack.c.b16 %v1453, %v1452
    %v1475 = vpack.c.b16 %v1455, %v1454
    %v1476 = vpack.c.b16 %v1457, %v1456
    %v1477 = vpack.c.b16 %v1459, %v1458
    %v1478 = vpack.c.b16 %v1461, %v1460
    %v1479 = vpack.c.b16 %v1463, %v1462
    %1496 = vmatprep.subr.bf16.mxu0 0
    %1497 = vmatpush1.bf16.msra.mxu0 %v1471
    %1498 = vmatprep.subr.bf16.mxu0 0
    %1499 = vmatpush1.bf16.msra.mxu0 %v1470
    %1500 = vmatprep.subr.bf16.mxu0 0
    %1501 = vmatpush1.bf16.msra.mxu0 %v1469
    %1502 = vmatprep.subr.bf16.mxu0 0
    %1503 = vmatpush1.bf16.msra.mxu0 %v1468
    %1504 = vmatprep.subr.bf16.mxu0 0
    %1505 = vmatpush1.bf16.msra.mxu0 %v1467
    %1506 = vmatprep.subr.bf16.mxu0 0
    %1507 = vmatpush1.bf16.msra.mxu0 %v1466
    %1508 = vmatprep.subr.bf16.mxu0 0
    %1509 = vmatpush1.bf16.msra.mxu0 %v1465
    %1510 = vmatprep.subr.bf16.mxu0 0
    %1511 = vmatpush1.bf16.msra.mxu0 %v1464
    %1512 = vmatprep.subr.bf16.mxu0 0
    %1513 = vmatpush2.bf16.msra.mxu0 %v1479
    %1514 = vmatprep.subr.bf16.mxu0 0
    %1515 = vmatpush2.bf16.msra.mxu0 %v1478
    %1516 = vmatprep.subr.bf16.mxu0 0
    %1517 = vmatpush2.bf16.msra.mxu0 %v1477
    %1518 = vmatprep.subr.bf16.mxu0 0
    %1519 = vmatpush2.bf16.msra.mxu0 %v1476
    %1520 = vmatprep.subr.bf16.mxu0 0
    %1521 = vmatpush2.bf16.msra.mxu0 %v1475
    %1522 = vmatprep.subr.bf16.mxu0 0
    %1523 = vmatpush2.bf16.msra.mxu0 %v1474
    %1524 = vmatprep.subr.bf16.mxu0 0
    %1525 = vmatpush2.bf16.msra.mxu0 %v1473
    %1526 = vmatprep.subr.bf16.mxu0 0
    %1527 = vmatpush2.bf16.msra.mxu0 %v1472
    %1528 = vmatprep.mubr.bf16.mxu0 %v1367
    %1529 = vmatmul.mubr.bf16.gmra.mxu0 %v1366
    %v1530 = vpop.f32.mrf.mxu0
    %v1531 = vadd.f32 0.0, %v1530
    %v1532 = vpop.f32.mrf.mxu0
    %v1533 = vpop.f32.mrf.mxu0
    %v1534 = vadd.f32 0.0, %v1533
    %v1535 = vpop.f32.mrf.mxu0
    %1536 = vdwg.mxu0
    %1537 = vst [vmem:[%s8] sm:$0xff] %v1531
    %1538 = vst [vmem:[%s8 + $0x8] sm:$0xff] %v1534
    // Predicated region
    $region50: #{classifier_forward.1} parent=1 // pred_check
      _
    $region51: #{classifier_forward.1} parent=1 // pred_check_branch
      %1540 = sbr.rel (0) target = $region53
    $region52: #{classifier_forward.1} parent=1 // pred_region
      _
    $region53: #{classifier_forward.1} parent=1 // pred_fallthru
      _
    // Predicated region
    $region54: #{classifier_forward.1} parent=1 // pred_check
      _
    $region55: #{classifier_forward.1} parent=1 // pred_check_branch
      %1542 = sbr.rel (0) target = $region57
    $region56: #{classifier_forward.1} parent=1 // pred_region
      _
    $region57: #{classifier_forward.1} parent=1 // pred_fallthru
      _
    %1543 = vsyncpa [#allocation3], 1
    %1544 = vsyncpa [#allocation5], 1
    %1545 = vsyncpa [#allocation8], 1

</llo_original>
